<compile_context>
chip_gen: v5e
topology: v5e:2x2
jax: 0.10.0
libtpu: 0.0.40
codegen_flags: <defaults>
</compile_context>

<pallas_src>
import functools

import jax
import jax.numpy as jnp
from jax import lax
from jax.experimental import pallas as pl
from jax.experimental.pallas import tpu as pltpu


def channel_attention_kernel(x_ref, w1t_ref, w2_ref, o_ref, *, true_hw):
    # x_ref  : (Bt, C, HWp)  Bt images, lane-dense (HWp % 128 == 0, zero-padded)
    # w1t_ref: (C, HID)      first Linear weight, pre-transposed (W1.T), f32
    # w2_ref : (C, HID)      second Linear weight, PyTorch (out, in) layout, f32
    # o_ref  : (Bt, C, HWp)
    x = x_ref[...]                                          # native dtype block
    bt, _, hwp = x.shape

    # ---- Global pooling per image (f32 accumulation over the lane axis). ----
    sums = jnp.sum(x, axis=2, keepdims=True, dtype=jnp.float32)           # (Bt, C, 1)
    avg = sums * jnp.float32(1.0 / true_hw)                               # padded lanes are 0
    if hwp != true_hw:
        # Mask padded lanes out of the max-pool.
        lane = lax.broadcasted_iota(jnp.int32, (1, 1, hwp), 2)
        xm = jnp.where(lane < true_hw, x, jnp.asarray(-jnp.inf, x.dtype))
    else:
        xm = x
    mx = jnp.max(xm, axis=2, keepdims=True).astype(jnp.float32)           # (Bt, C, 1)

    # ---- Fused tiny FC on both pooled vectors (VPU/XLU only, MXU-free). ----
    pooled = jnp.concatenate([avg, mx], axis=0)                           # (2Bt, C, 1)
    w1t = w1t_ref[...]                                                    # (C, HID)
    w2 = w2_ref[...]                                                      # (C, HID)
    hid = jnp.maximum(jnp.sum(pooled * w1t, axis=1, keepdims=True), 0.0)  # (2Bt, 1, HID)
    g = jax.nn.sigmoid(jnp.sum(w2 * hid, axis=2, keepdims=True))          # (2Bt, C, 1)
    gate = g[:bt] + g[bt:]                                                # (Bt, C, 1)

    # ---- Apply the per-channel gate in the input dtype (no f32 tile copy). ----
    o_ref[...] = x * gate.astype(o_ref.dtype)


def channel_attention(x, w1, w2, *, block_target_bytes=2 << 20):
    """x: (B, C, H, W); w1: (C//r, C); w2: (C, C//r)  (PyTorch Linear layouts)."""
    B, C, H, W = x.shape
    HW = H * W
    HID = w1.shape[0]
    itemsize = jnp.dtype(x.dtype).itemsize

    # Lane-dense layout: pad the flattened spatial axis to a multiple of 128 so
    # every full-tile op and the final store use unmasked full-width vregs.
    HW_pad = max(128, ((HW + 127) // 128) * 128)
    x2 = x.reshape(B, C, HW)
    if HW_pad != HW:
        x2 = jnp.pad(x2, ((0, 0), (0, 0), (0, HW_pad - HW)))

    # Batch Bt images per grid step (blocks ~block_target_bytes) to amortize the
    # per-step overhead, but keep >= 2 grid steps for the 2 TensorCores on v7x.
    per_image = C * HW_pad * itemsize
    Bt = max(1, min(B, block_target_bytes // max(per_image, 1)))
    if B >= 2:
        Bt = min(Bt, -(-B // 2))
    B_pad = -(-B // Bt) * Bt
    if B_pad != B:
        x2 = jnp.pad(x2, ((0, B_pad - B), (0, 0), (0, 0)))

    w1t = w1.T.astype(jnp.float32)                          # (C, HID)
    w2f = w2.astype(jnp.float32)                            # (C, HID)

    # Scoped-VMEM budget: double-buffered input + output blocks + weights.
    block_bytes = Bt * per_image
    weight_bytes = 2 * C * HID * 4
    vmem_limit = int(min(max(4 * block_bytes + 2 * weight_bytes + (1 << 20),
                             16 << 20), 56 << 20))
    # TODO(synk): if a single image (C*HW_pad*itemsize) exceeds ~12 MiB the
    # whole-image block no longer fits double-buffered in v7x's 64 MiB VMEM;
    # switch to a two-phase (reduce-then-apply) HW-tiled grid in that case.

    kernel = functools.partial(channel_attention_kernel, true_hw=HW)

    cost = pl.CostEstimate(
        flops=int(B_pad * (3 * C * HW_pad + 8 * C * HID)),
        transcendentals=int(2 * B_pad * C),
        bytes_accessed=int(2 * B_pad * C * HW_pad * itemsize + 2 * weight_bytes),
    )

    out2 = pl.pallas_call(
        kernel,
        out_shape=jax.ShapeDtypeStruct((B_pad, C, HW_pad), x.dtype),
        grid=(B_pad // Bt,),
        in_specs=[
            pl.BlockSpec((Bt, C, HW_pad), lambda b: (b, 0, 0)),  # Bt images / step
            pl.BlockSpec((C, HID), lambda b: (0, 0)),            # resident weights
            pl.BlockSpec((C, HID), lambda b: (0, 0)),
        ],
        out_specs=pl.BlockSpec((Bt, C, HW_pad), lambda b: (b, 0, 0)),
        compiler_params=pltpu.CompilerParams(
            dimension_semantics=("parallel",),
            vmem_limit_bytes=vmem_limit,
        ),
        cost_estimate=cost,
    )(x2, w1t, w2f)

    return out2[:B, :, :HW].reshape(B, C, H, W)


def channel_attention_ref(x, w1, w2):
    avg = jnp.mean(x, axis=(2, 3))                          # (B, C)
    mx = jnp.max(x, axis=(2, 3))                            # (B, C)

    def fc(v):
        h = jax.nn.relu(jnp.dot(v, w1.T, precision=lax.Precision.HIGHEST))
        return jax.nn.sigmoid(jnp.dot(h, w2.T, precision=lax.Precision.HIGHEST))

    gate = fc(avg) + fc(mx)                                 # (B, C)
    return x * gate[:, :, None, None]


if __name__ == "__main__":
    key = jax.random.PRNGKey(0)

    def run_case(case_key, B, C, H, W, red):
        kx, k1, k2 = jax.random.split(case_key, 3)
        HID = max(1, C // red)
        x = jax.random.normal(kx, (B, C, H, W), dtype=jnp.float32)
        # Linear(C -> C//r, bias=False) and Linear(C//r -> C, bias=False) weights.
        w1 = 0.2 * jax.random.normal(k1, (HID, C), dtype=jnp.float32)
        w2 = 0.2 * jax.random.normal(k2, (C, HID), dtype=jnp.float32)
        out = jax.block_until_ready(channel_attention(x, w1, w2))
        ref = jax.block_until_ready(channel_attention_ref(x, w1, w2))
        assert out.shape == (B, C, H, W)
        assert jnp.allclose(out, ref, atol=1e-5, rtol=1e-5), "mismatch vs reference"

    ka, kb = jax.random.split(key)
    run_case(ka, B=2, C=32, H=16, W=16, red=4)   # HW = 256: already lane-dense
    run_case(kb, B=3, C=32, H=14, W=14, red=4)   # HW = 196: lane + batch padding path
    print("KERNEL_OK")
</pallas_src>

<mosaic_0001>
module attributes {stable_mosaic.version = 11 : i64} {
  func.func @channel_attention_kernel(%arg0: i32, %arg1: memref<1x32x256xf32, #tpu.memory_space<vmem>>, %arg2: memref<32x8xf32, #tpu.memory_space<vmem>>, %arg3: memref<32x8xf32, #tpu.memory_space<vmem>>, %arg4: memref<1x32x256xf32, #tpu.memory_space<vmem>>) attributes {dimension_semantics = [#tpu.dimension_semantics<parallel>], iteration_bounds = array<i64: 2>, scalar_prefetch = 0 : i64, scratch_operands = 0 : i64, tpu.core_type = #tpu.core_type<tc>, window_params = [{transform_indices = @transform_0, window_bounds = array<i64: 1, 32, 256>}, {pipeline_mode = #tpu.pipeline_mode<synchronous>, transform_indices = @transform_1, window_bounds = array<i64: 32, 8>}, {pipeline_mode = #tpu.pipeline_mode<synchronous>, transform_indices = @transform_2, window_bounds = array<i64: 32, 8>}, {transform_indices = @transform_3, window_bounds = array<i64: 1, 32, 256>}]} {
    %c0 = arith.constant 0 : index
    %c0_0 = arith.constant 0 : index
    %c0_1 = arith.constant 0 : index
    %0 = vector.load %arg1[%c0, %c0_0, %c0_1] : memref<1x32x256xf32, #tpu.memory_space<vmem>>, vector<1x32x256xf32>
    %cst = arith.constant dense<0.000000e+00> : vector<1x32xf32>
    %1 = vector.multi_reduction <add>, %0, %cst [2] : vector<1x32x256xf32> to vector<1x32xf32>
    %2 = vector.shape_cast %1 : vector<1x32xf32> to vector<1x32x1xf32>
    %cst_2 = arith.constant 3.906250e-03 : f32
    %3 = vector.broadcast %cst_2 : f32 to vector<1x32x1xf32>
    %4 = arith.mulf %2, %3 : vector<1x32x1xf32>
    %cst_3 = arith.constant dense<0xFF800000> : vector<1x32xf32>
    %5 = vector.multi_reduction <maximumf>, %0, %cst_3 [2] : vector<1x32x256xf32> to vector<1x32xf32>
    %6 = vector.shape_cast %5 : vector<1x32xf32> to vector<1x32x1xf32>
    %7 = tpu.concatenate %4, %6 in 0 : vector<1x32x1xf32>, vector<1x32x1xf32> -> vector<2x32x1xf32>
    %c0_4 = arith.constant 0 : index
    %c0_5 = arith.constant 0 : index
    %8 = vector.load %arg2[%c0_4, %c0_5] : memref<32x8xf32, #tpu.memory_space<vmem>>, vector<32x8xf32>
    %c0_6 = arith.constant 0 : index
    %c0_7 = arith.constant 0 : index
    %9 = vector.load %arg3[%c0_6, %c0_7] : memref<32x8xf32, #tpu.memory_space<vmem>>, vector<32x8xf32>
    %10 = vector.shape_cast %8 : vector<32x8xf32> to vector<1x32x8xf32>
    %11 = vector.broadcast %7 : vector<2x32x1xf32> to vector<2x32x8xf32>
    %12 = vector.broadcast %10 : vector<1x32x8xf32> to vector<2x32x8xf32>
    %13 = arith.mulf %11, %12 : vector<2x32x8xf32>
    %cst_8 = arith.constant dense<0.000000e+00> : vector<2x8xf32>
    %14 = vector.multi_reduction <add>, %13, %cst_8 [1] : vector<2x32x8xf32> to vector<2x8xf32>
    %15 = vector.shape_cast %14 : vector<2x8xf32> to vector<2x1x8xf32>
    %cst_9 = arith.constant 0.000000e+00 : f32
    %16 = vector.broadcast %cst_9 : f32 to vector<2x1x8xf32>
    %17 = arith.maximumf %15, %16 : vector<2x1x8xf32>
    %18 = vector.shape_cast %9 : vector<32x8xf32> to vector<1x32x8xf32>
    %19 = vector.broadcast %18 : vector<1x32x8xf32> to vector<2x32x8xf32>
    %20 = vector.broadcast %17 : vector<2x1x8xf32> to vector<2x32x8xf32>
    %21 = arith.mulf %19, %20 : vector<2x32x8xf32>
    %cst_10 = arith.constant dense<0.000000e+00> : vector<2x32xf32>
    %22 = vector.multi_reduction <add>, %21, %cst_10 [2] : vector<2x32x8xf32> to vector<2x32xf32>
    %23 = vector.shape_cast %22 : vector<2x32xf32> to vector<2x32x1xf32>
    %24 = arith.negf %23 : vector<2x32x1xf32>
    %25 = math.exp %24 : vector<2x32x1xf32>
    %cst_11 = arith.constant 1.000000e+00 : f32
    %26 = vector.broadcast %cst_11 : f32 to vector<2x32x1xf32>
    %27 = arith.addf %26, %25 : vector<2x32x1xf32>
    %28 = arith.divf %26, %27 : vector<2x32x1xf32>
    %29 = vector.extract_strided_slice %28 {offsets = [0, 0, 0], sizes = [1, 32, 1], strides = [1, 1, 1]} : vector<2x32x1xf32> to vector<1x32x1xf32>
    %30 = vector.extract_strided_slice %28 {offsets = [1, 0, 0], sizes = [1, 32, 1], strides = [1, 1, 1]} : vector<2x32x1xf32> to vector<1x32x1xf32>
    %31 = arith.addf %29, %30 : vector<1x32x1xf32>
    %32 = vector.broadcast %31 : vector<1x32x1xf32> to vector<1x32x256xf32>
    %33 = arith.mulf %0, %32 : vector<1x32x256xf32>
    %c0_12 = arith.constant 0 : index
    %c0_13 = arith.constant 0 : index
    %c0_14 = arith.constant 0 : index
    %34 = vector.load %arg4[%c0_12, %c0_13, %c0_14] : memref<1x32x256xf32, #tpu.memory_space<vmem>>, vector<1x32x256xf32>
    tpu.vector_store %arg4[%c0_12, %c0_13, %c0_14], %33 {strides = array<i32>} : memref<1x32x256xf32, #tpu.memory_space<vmem>>, vector<1x32x256xf32>,
    return
  }
  func.func @transform_0(%arg0: i32) -> (i32, i32, i32) {
    %c0_i32 = arith.constant 0 : i32
    %c0_i32_0 = arith.constant 0 : i32
    %c0_i32_1 = arith.constant 0 : i32
    return %arg0, %c0_i32, %c0_i32_0 : i32, i32, i32
  }
  func.func @transform_1(%arg0: i32) -> (i32, i32) {
    %c0_i32 = arith.constant 0 : i32
    %c0_i32_0 = arith.constant 0 : i32
    %c0_i32_1 = arith.constant 0 : i32
    return %c0_i32, %c0_i32_0 : i32, i32
  }
  func.func @transform_2(%arg0: i32) -> (i32, i32) {
    %c0_i32 = arith.constant 0 : i32
    %c0_i32_0 = arith.constant 0 : i32
    %c0_i32_1 = arith.constant 0 : i32
    return %c0_i32, %c0_i32_0 : i32, i32
  }
  func.func @transform_3(%arg0: i32) -> (i32, i32, i32) {
    %c0_i32 = arith.constant 0 : i32
    %c0_i32_0 = arith.constant 0 : i32
    %c0_i32_1 = arith.constant 0 : i32
    return %arg0, %c0_i32, %c0_i32_0 : i32, i32, i32
  }
}

</mosaic_0001>

<llo_original>
// kernel: tpu_custom_call.1
$region0: #{tpu_custom_call.1}
  #allocation0 [shape = 'u32[]', space=smem, size = 0x4, offset = 0x4, fixed_abs, tag = 'smem constant byte address 0x4 - core index']
  #allocation1 [shape = 'u32[72,128]{1,0:T(1,128)}', space=vmem, size = 0x9000, scoped, tag = 'internal scratch']
  %s0 = inlined_call_operand.hbm [shape: f32[2,32,256], index: 0, kind: input, shape index: {}]
  %s1 = inlined_call_operand.vmem [shape: f32[32,8], index: 1, kind: input, shape index: {}]
  %s2 = inlined_call_operand.vmem [shape: f32[32,8], index: 2, kind: input, shape index: {}]
  %s3 = inlined_call_operand.hbm [shape: f32[2,32,256], index: 3, kind: output, shape index: {}]
  %s4 = sld [smem:[#allocation0]]
  $region49: #{tpu_custom_call.1} parent=0
    _
  %s6 = ssub.s32 1, %s4
  %s7 = scalar_select 0, %s6, %s4
  $region1: #{tpu_custom_call.1} parent=0
    #allocation2 [shape = 'u8[65536]{0}', space=vmem, size = 0x10000, scoped, tag = 'input window, operand 0']
    #allocation3 [shape = 's32[2]{0}', space=sflag, size = 0x8, scoped, tag = 'scoped memory for tpu_custom_call.1']
    #allocation4 [shape = 's32[2]{0}', space=sflag, size = 0x8, scoped, tag = 'scoped memory for tpu_custom_call.1']
    #allocation5 [shape = 'u8[65536]{0}', space=vmem, size = 0x10000, scoped, tag = 'output window, operand 0']
    %8 = vsyncpa [#allocation3], 0
    %s9 = scalar_lea.sflag [#allocation3], 1
    %10 = vsyncpa %s9, 0
    %11 = vsyncpa [#allocation4], 0
    %s12 = scalar_lea.sflag [#allocation4], 1
    %13 = vsyncpa %s12, 0
    loop: start=0, step=1, limit=4
    $region2: #{tpu_custom_call.1} parent=1 // loop_pre_header
      _
    $region3: #{tpu_custom_call.1} parent=1 // loop_header
      %s15 = sphi 0, %s19
      %p16 = scmp.ge.s32.totalorder %s15, 4
      %s25 = sphi 0, %s27
      %s28 = sphi 0, %s25
      %s29 = sphi 0, %s28
      %s45 = sphi 0, %s29
      %s49 = sphi 0, %s49
      %s51 = sphi 0, %s49
      %s52 = sphi 0, %s51
      %s66 = sphi 0, %s52
      %s70 = sphi 0, %s70
      %s72 = sphi 0, %s70
      %s73 = sphi 0, %s72
      %s87 = sphi 0, %s73
      %s93 = sphi 0, %s95
      %s96 = sphi 0, %s93
      %s97 = sphi 0, %s96
      %s113 = sphi 0, %s97
    $region4: #{tpu_custom_call.1} parent=1 // loop_header_branch
      %18 = sbr.rel (%p16) target = $region8
    $region5: #{tpu_custom_call.1} parent=1 // loop_body
      %s20 = ssub.s32 %s15, 1
      %s21 = ssub.s32 %s15, 2
      %s22 = sadd.s32 %s15, 1
      %s23 = ssub.s32 %s15, %s22
      %p24 = scmp.eq.s32.totalorder %s23, 0
      %s26 = sadd.s32 %s25, 1
      %s27 = scalar_select %p24, %s25, %s26
      %p30 = pneg %p24
      %p31 = scmp.eq.s32.totalorder %s15, 1
      %p32 = por %p30, %p31
      %p33 = scmp.ne.s32.totalorder %s25, %s28
      %p34 = scmp.eq.s32.totalorder %s15, 0
      %p35 = por %p33, %p34
      %p36 = scmp.ne.s32.totalorder %s25, %s28
      %p37 = scmp.eq.s32.totalorder %s20, 1
      %p38 = por %p36, %p37
      %p39 = scmp.ne.s32.totalorder %s28, %s29
      %p40 = scmp.eq.s32.totalorder %s20, 0
      %p41 = por %p39, %p40
      %p42 = scmp.ne.s32.totalorder %s28, %s29
      %p43 = scmp.eq.s32.totalorder %s21, 1
      %p44 = por %p42, %p43
      %p46 = scmp.ne.s32.totalorder %s29, %s45
      %p47 = scmp.eq.s32.totalorder %s21, 0
      %p48 = por %p46, %p47
      %s50 = sadd.s32 %s49, 1
      %p53 = scmp.eq.s32.totalorder %s15, 1
      %p54 = scmp.ne.s32.totalorder %s49, %s51
      %p55 = scmp.eq.s32.totalorder %s15, 0
      %p56 = por %p54, %p55
      %p57 = scmp.ne.s32.totalorder %s49, %s51
      %p58 = scmp.eq.s32.totalorder %s20, 1
      %p59 = por %p57, %p58
      %p60 = scmp.ne.s32.totalorder %s51, %s52
      %p61 = scmp.eq.s32.totalorder %s20, 0
      %p62 = por %p60, %p61
      %p63 = scmp.ne.s32.totalorder %s51, %s52
      %p64 = scmp.eq.s32.totalorder %s21, 1
      %p65 = por %p63, %p64
      %p67 = scmp.ne.s32.totalorder %s52, %s66
      %p68 = scmp.eq.s32.totalorder %s21, 0
      %p69 = por %p67, %p68
      %s71 = sadd.s32 %s70, 1
      %p74 = scmp.eq.s32.totalorder %s15, 1
      %p75 = scmp.ne.s32.totalorder %s70, %s72
      %p76 = scmp.eq.s32.totalorder %s15, 0
      %p77 = por %p75, %p76
      %p78 = scmp.ne.s32.totalorder %s70, %s72
      %p79 = scmp.eq.s32.totalorder %s20, 1
      %p80 = por %p78, %p79
      %p81 = scmp.ne.s32.totalorder %s72, %s73
      %p82 = scmp.eq.s32.totalorder %s20, 0
      %p83 = por %p81, %p82
      %p84 = scmp.ne.s32.totalorder %s72, %s73
      %p85 = scmp.eq.s32.totalorder %s21, 1
      %p86 = por %p84, %p85
      %p88 = scmp.ne.s32.totalorder %s73, %s87
      %p89 = scmp.eq.s32.totalorder %s21, 0
      %p90 = por %p88, %p89
      %s91 = ssub.s32 %s15, %s22
      %p92 = scmp.eq.s32.totalorder %s91, 0
      %s94 = sadd.s32 %s93, 1
      %s95 = scalar_select %p92, %s93, %s94
      %p98 = pneg %p92
      %p99 = scmp.eq.s32.totalorder %s15, 1
      %p100 = por %p98, %p99
      %p101 = scmp.ne.s32.totalorder %s93, %s96
      %p102 = scmp.eq.s32.totalorder %s15, 0
      %p103 = por %p101, %p102
      %p104 = scmp.ne.s32.totalorder %s93, %s96
      %p105 = scmp.eq.s32.totalorder %s20, 1
      %p106 = por %p104, %p105
      %p107 = scmp.ne.s32.totalorder %s96, %s97
      %p108 = scmp.eq.s32.totalorder %s20, 0
      %p109 = por %p107, %p108
      %p110 = scmp.ne.s32.totalorder %s96, %s97
      %p111 = scmp.eq.s32.totalorder %s21, 1
      %p112 = por %p110, %p111
      %p114 = scmp.ne.s32.totalorder %s97, %s113
      %p115 = scmp.eq.s32.totalorder %s21, 0
      %p116 = por %p114, %p115
      %p117 = scmp.le.s32.totalorder 1, %s15
      %p118 = scmp.lt.s32.totalorder %s15, 3
      %p119 = pnand %p117, %p118
      %p120 = pneg %p119
      // Predicated region
      $region9: #{tpu_custom_call.1} parent=5 // pred_check
        _
      $region10: #{tpu_custom_call.1} parent=5 // pred_check_branch
        %122 = sbr.rel (%p119) target = $region12
      $region11: #{tpu_custom_call.1} parent=5 // pred_region
        %s123 = ssub.s32 %s15, 1
        // Predicated region
        $region13: #{tpu_custom_call.1} parent=11 // pred_check
          %p124 = pneg %p62
        $region14: #{tpu_custom_call.1} parent=11 // pred_check_branch
          %126 = sbr.rel (%p124) target = $region16
        $region15: #{tpu_custom_call.1} parent=11 // pred_region
          _
        $region16: #{tpu_custom_call.1} parent=11 // pred_fallthru
          _
        // Predicated region
        $region17: #{tpu_custom_call.1} parent=11 // pred_check
          %p127 = pneg %p83
        $region18: #{tpu_custom_call.1} parent=11 // pred_check_branch
          %129 = sbr.rel (%p127) target = $region20
        $region19: #{tpu_custom_call.1} parent=11 // pred_region
          _
        $region20: #{tpu_custom_call.1} parent=11 // pred_fallthru
          _
      $region12: #{tpu_custom_call.1} parent=5 // pred_fallthru
        _
      %p130 = scmp.lt.s32.totalorder %s15, 2
      // Predicated region
      $region21: #{tpu_custom_call.1} parent=5 // pred_check
        %p131 = pneg %p130
      $region22: #{tpu_custom_call.1} parent=5 // pred_check_branch
        %133 = sbr.rel (%p131) target = $region24
      $region23: #{tpu_custom_call.1} parent=5 // pred_region
        // Predicated region
        $region25: #{tpu_custom_call.1} parent=23 // pred_check
          %p134 = pneg %p35
        $region26: #{tpu_custom_call.1} parent=23 // pred_check_branch
          %136 = sbr.rel (%p134) target = $region28
        $region27: #{tpu_custom_call.1} parent=23 // pred_region
          %s137 = sand.u32 %s25, 1
          %s138 = scalar_lea.sflag [#allocation3], %s137
          %s139 = sand.u32 %s25, 1
          %s140 = smul.addr %s139, 64
          %s141 = scalar_lea.vmem [#allocation2], %s140
          %143 = vsyncadd %s138, 0
          %s144 = smul.addr %s15, 8
          %s145 = smul.addr %s144, 8
          %s146 = scalar_lea.hbm %s0, %s145
          %s147 = sshll.u32 %s146, 4
          %s148 = int_to_ptr.hbm [resolvable:$true] %s147
          %s149 = sshll.u32 %s141, 4
          %s150 = int_to_ptr.vmem [resolvable:$true] %s149
          %155 = dma.hbm_to_vmem [thread:$0]  %s148, 1024, %s150, %s138, 256, 256, 16
        $region28: #{tpu_custom_call.1} parent=23 // pred_fallthru
          _
      $region24: #{tpu_custom_call.1} parent=5 // pred_fallthru
        _
      %p156 = scmp.le.s32.totalorder 1, %s15
      %p157 = scmp.lt.s32.totalorder %s15, 3
      %p158 = pnand %p156, %p157
      %p159 = pneg %p158
      // Predicated region
      $region29: #{tpu_custom_call.1} parent=5 // pred_check
        _
      $region30: #{tpu_custom_call.1} parent=5 // pred_check_branch
        %161 = sbr.rel (%p158) target = $region32
      $region31: #{tpu_custom_call.1} parent=5 // pred_region
        %s162 = ssub.s32 %s15, 1
        %s163 = sand.u32 %s28, 1
        %s164 = scalar_lea.sflag [#allocation3], %s163
        %s165 = sand.u32 %s28, 1
        %s166 = smul.addr %s165, 64
        %s167 = scalar_lea.vmem [#allocation2], %s166
        // Predicated region
        $region33: #{tpu_custom_call.1} parent=31 // pred_check
          %p168 = pneg %p41
        $region34: #{tpu_custom_call.1} parent=31 // pred_check_branch
          %170 = sbr.rel (%p168) target = $region36
        $region35: #{tpu_custom_call.1} parent=31 // pred_region
          %172 = dma.done %s164, 1024
        $region36: #{tpu_custom_call.1} parent=31 // pred_fallthru
          _
        %s173 = sand.u32 %s28, 1
        %s174 = scalar_lea.sflag [#allocation3], %s173
        %s175 = sand.u32 %s28, 1
        %s176 = smul.addr %s175, 64
        %s177 = scalar_lea.vmem [#allocation2], %s176
        %p178 = pneg %p41
        %p179 = pneg %p38
        %p180 = pneg %p62
        %p181 = pneg %p59
        %p182 = pneg %p83
        %p183 = pneg %p80
        %p184 = pneg %p109
        %p185 = pneg %p106
        %s186 = sand.u32 %s96, 1
        %s187 = scalar_lea.sflag [#allocation4], %s186
        %s188 = sand.u32 %s96, 1
        %s189 = smul.addr %s188, 64
        %s190 = scalar_lea.vmem [#allocation5], %s189
        %v191 = vld [vmem:[%s167] sm:$0xff]
        %v192 = vld [vmem:[%s167 + $0x8] sm:$0xff]
        %v193 = vld [vmem:[%s167 + $0x10] sm:$0xff]
        %v194 = vld [vmem:[%s167 + $0x18] sm:$0xff]
        %v195 = vld [vmem:[%s167 + $0x20] sm:$0xff]
        %v196 = vld [vmem:[%s167 + $0x28] sm:$0xff]
        %v197 = vld [vmem:[%s167 + $0x30] sm:$0xff]
        %v198 = vld [vmem:[%s167 + $0x38] sm:$0xff]
        %v199 = vadd.f32 %v191, %v192
        %200 = vadd.xlane.f32.xlu0 %v199
        %v201 = vpop.xlane.xlu0 %200
        %v202 = vadd.f32 %v193, %v194
        %203 = vadd.xlane.f32.xlu0 %v202
        %v204 = vpop.xlane.xlu0 %203
        %v205 = vadd.f32 %v195, %v196
        %206 = vadd.xlane.f32.xlu0 %v205
        %v207 = vpop.xlane.xlu0 %206
        %v208 = vadd.f32 %v197, %v198
        %209 = vadd.xlane.f32.xlu0 %v208
        %v210 = vpop.xlane.xlu0 %209
        %v211 = vmul.f32 %v201, 0.00390625
        %v212 = vmul.f32 %v204, 0.00390625
        %v213 = vmul.f32 %v207, 0.00390625
        %v214 = vmul.f32 %v210, 0.00390625
        %v215 = vmax.f32 %v191, %v192
        %216 = vmax.xlane.f32.xlu0 %v215
        %v217 = vpop.xlane.xlu0 %216
        %v218 = vmax.f32 %v193, %v194
        %219 = vmax.xlane.f32.xlu0 %v218
        %v220 = vpop.xlane.xlu0 %219
        %v221 = vmax.f32 %v195, %v196
        %222 = vmax.xlane.f32.xlu0 %v221
        %v223 = vpop.xlane.xlu0 %222
        %v224 = vmax.f32 %v197, %v198
        %225 = vmax.xlane.f32.xlu0 %v224
        %v226 = vpop.xlane.xlu0 %225
        %v227 = vld [vmem:[%s1] sm:$0xff]
        %v228 = vld [vmem:[%s1 + $0x8] sm:$0xff]
        %v229 = vld [vmem:[%s1 + $0x10] sm:$0xff]
        %v230 = vld [vmem:[%s1 + $0x18] sm:$0xff]
        %v231 = vld [vmem:[%s2] sm:$0xff]
        %v232 = vld [vmem:[%s2 + $0x8] sm:$0xff]
        %v233 = vld [vmem:[%s2 + $0x10] sm:$0xff]
        %v234 = vld [vmem:[%s2 + $0x18] sm:$0xff]
        %236 = vset.pattern.permute.xlu0 0
        %237 = vperm.xlu0 %236, %v211
        %v238 = vpop.permute.xlu0 %237
        %241 = vset.pattern.permute.xlu0 0
        %242 = vperm.xlu0 %241, %v212
        %v243 = vpop.permute.xlu0 %242
        %246 = vset.pattern.permute.xlu0 0
        %247 = vperm.xlu0 %246, %v213
        %v248 = vpop.permute.xlu0 %247
        %251 = vset.pattern.permute.xlu0 0
        %252 = vperm.xlu0 %251, %v214
        %v253 = vpop.permute.xlu0 %252
        %256 = vset.pattern.permute.xlu0 0
        %257 = vperm.xlu0 %256, %v217
        %v258 = vpop.permute.xlu0 %257
        %261 = vset.pattern.permute.xlu0 0
        %262 = vperm.xlu0 %261, %v220
        %v263 = vpop.permute.xlu0 %262
        %266 = vset.pattern.permute.xlu0 0
        %267 = vperm.xlu0 %266, %v223
        %v268 = vpop.permute.xlu0 %267
        %271 = vset.pattern.permute.xlu0 0
        %272 = vperm.xlu0 %271, %v226
        %v273 = vpop.permute.xlu0 %272
        %v275 = vmul.f32 %v238, %v227
        %v276 = vmul.f32 %v243, %v228
        %v277 = vmul.f32 %v248, %v229
        %v278 = vmul.f32 %v253, %v230
        %v279 = vmul.f32 %v258, %v227
        %v280 = vmul.f32 %v263, %v228
        %v281 = vmul.f32 %v268, %v229
        %v282 = vmul.f32 %v273, %v230
        %vm283 = vcmask 64512
        %v284 = vsel %vm283, %v275, 0.0
        %v285 = vsel %vm283, %v276, 0.0
        %v286 = vadd.f32 %v284, %v285
        %v287 = vsel %vm283, %v277, 0.0
        %v288 = vadd.f32 %v286, %v287
        %v289 = vsel %vm283, %v278, 0.0
        %v290 = vadd.f32 %v288, %v289
        %v291 = vrot.slane %v290, 4
        %v292 = vadd.f32 %v290, %v291
        %v293 = vrot.slane %v292, 2
        %v294 = vadd.f32 %v292, %v293
        %v295 = vrot.slane %v294, 1
        %v296 = vadd.f32 %v294, %v295
        %v297 = vsel %vm283, %v279, 0.0
        %v298 = vsel %vm283, %v280, 0.0
        %v299 = vadd.f32 %v297, %v298
        %v300 = vsel %vm283, %v281, 0.0
        %v301 = vadd.f32 %v299, %v300
        %v302 = vsel %vm283, %v282, 0.0
        %v303 = vadd.f32 %v301, %v302
        %v304 = vrot.slane %v303, 4
        %v305 = vadd.f32 %v303, %v304
        %v306 = vrot.slane %v305, 2
        %v307 = vadd.f32 %v305, %v306
        %v308 = vrot.slane %v307, 1
        %v309 = vadd.f32 %v307, %v308
        %v310 = vmax.f32 %v296, 0.0
        %v311 = vmax.f32 %v309, 0.0
        %v312 = vmul.f32 %v231, %v310
        %v313 = vmul.f32 %v232, %v310
        %v314 = vmul.f32 %v233, %v310
        %v315 = vmul.f32 %v234, %v310
        %v316 = vmul.f32 %v231, %v311
        %v317 = vmul.f32 %v232, %v311
        %v318 = vmul.f32 %v233, %v311
        %v319 = vmul.f32 %v234, %v311
        %v320 = vsel %vm283, %v312, 0.0
        %321 = vadd.xlane.f32.xlu0 %v320
        %v322 = vpop.xlane.xlu0 %321
        %v323 = vsel %vm283, %v313, 0.0
        %324 = vadd.xlane.f32.xlu0 %v323
        %v325 = vpop.xlane.xlu0 %324
        %v326 = vsel %vm283, %v314, 0.0
        %327 = vadd.xlane.f32.xlu0 %v326
        %v328 = vpop.xlane.xlu0 %327
        %v329 = vsel %vm283, %v315, 0.0
        %330 = vadd.xlane.f32.xlu0 %v329
        %v331 = vpop.xlane.xlu0 %330
        %v332 = vsel %vm283, %v316, 0.0
        %333 = vadd.xlane.f32.xlu0 %v332
        %v334 = vpop.xlane.xlu0 %333
        %v335 = vsel %vm283, %v317, 0.0
        %336 = vadd.xlane.f32.xlu0 %v335
        %v337 = vpop.xlane.xlu0 %336
        %v338 = vsel %vm283, %v318, 0.0
        %339 = vadd.xlane.f32.xlu0 %v338
        %v340 = vpop.xlane.xlu0 %339
        %v341 = vsel %vm283, %v319, 0.0
        %342 = vadd.xlane.f32.xlu0 %v341
        %v343 = vpop.xlane.xlu0 %342
        %v344 = vxor.u32 %v322, 2147483648
        %v345 = vxor.u32 %v325, 2147483648
        %v346 = vxor.u32 %v328, 2147483648
        %v347 = vxor.u32 %v331, 2147483648
        %v348 = vxor.u32 %v334, 2147483648
        %v349 = vxor.u32 %v337, 2147483648
        %v350 = vxor.u32 %v340, 2147483648
        %v351 = vxor.u32 %v343, 2147483648
        %v352 = vmul.f32 %v344, 1.442695
        %v353 = vpow.pop %v352
        %v354 = vmul.f32 %v345, 1.442695
        %v355 = vpow.pop %v354
        %v356 = vmul.f32 %v346, 1.442695
        %v357 = vpow.pop %v356
        %v358 = vmul.f32 %v347, 1.442695
        %v359 = vpow.pop %v358
        %v360 = vmul.f32 %v348, 1.442695
        %v361 = vpow.pop %v360
        %v362 = vmul.f32 %v349, 1.442695
        %v363 = vpow.pop %v362
        %v364 = vmul.f32 %v350, 1.442695
        %v365 = vpow.pop %v364
        %v366 = vmul.f32 %v351, 1.442695
        %v367 = vpow.pop %v366
        %v368 = vadd.f32 %v353, 1.0
        %v369 = vadd.f32 %v355, 1.0
        %v370 = vadd.f32 %v357, 1.0
        %v371 = vadd.f32 %v359, 1.0
        %v372 = vadd.f32 %v361, 1.0
        %v373 = vadd.f32 %v363, 1.0
        %v374 = vadd.f32 %v365, 1.0
        %v375 = vadd.f32 %v367, 1.0
        %v376 = vrcp.pop %v368
        %v377 = vmul.f32 %v368, %v376
        %v378 = vsub.f32 1.0, %v377
        %v379 = vmul.f32 %v376, %v378
        %v380 = vadd.f32 %v376, %v379
        %vm381 = vweird.f32 %v368
        %vm382 = vweird.f32 %v376
        %vm383 = vmor %vm381, %vm382
        %v384 = vsel %vm383, %v376, %v380
        %v385 = vand.u32 2147483647, %v368
        %vm386 = vcmp.eq.f32.partialorder %v385, 8.507059e+37
        %v387 = vand.u32 %v368, 2147483648
        %v388 = vor.u32 1.1754944e-38, %v387
        %v389 = vsel %vm386, %v388, %v384
        %v390 = vmul.f32 1.0, %v389
        %v391 = vrcp.pop %v369
        %v392 = vmul.f32 %v369, %v391
        %v393 = vsub.f32 1.0, %v392
        %v394 = vmul.f32 %v391, %v393
        %v395 = vadd.f32 %v391, %v394
        %vm396 = vweird.f32 %v369
        %vm397 = vweird.f32 %v391
        %vm398 = vmor %vm396, %vm397
        %v399 = vsel %vm398, %v391, %v395
        %v400 = vand.u32 2147483647, %v369
        %vm401 = vcmp.eq.f32.partialorder %v400, 8.507059e+37
        %v402 = vand.u32 %v369, 2147483648
        %v403 = vor.u32 1.1754944e-38, %v402
        %v404 = vsel %vm401, %v403, %v399
        %v405 = vmul.f32 1.0, %v404
        %v406 = vrcp.pop %v370
        %v407 = vmul.f32 %v370, %v406
        %v408 = vsub.f32 1.0, %v407
        %v409 = vmul.f32 %v406, %v408
        %v410 = vadd.f32 %v406, %v409
        %vm411 = vweird.f32 %v370
        %vm412 = vweird.f32 %v406
        %vm413 = vmor %vm411, %vm412
        %v414 = vsel %vm413, %v406, %v410
        %v415 = vand.u32 2147483647, %v370
        %vm416 = vcmp.eq.f32.partialorder %v415, 8.507059e+37
        %v417 = vand.u32 %v370, 2147483648
        %v418 = vor.u32 1.1754944e-38, %v417
        %v419 = vsel %vm416, %v418, %v414
        %v420 = vmul.f32 1.0, %v419
        %v421 = vrcp.pop %v371
        %v422 = vmul.f32 %v371, %v421
        %v423 = vsub.f32 1.0, %v422
        %v424 = vmul.f32 %v421, %v423
        %v425 = vadd.f32 %v421, %v424
        %vm426 = vweird.f32 %v371
        %vm427 = vweird.f32 %v421
        %vm428 = vmor %vm426, %vm427
        %v429 = vsel %vm428, %v421, %v425
        %v430 = vand.u32 2147483647, %v371
        %vm431 = vcmp.eq.f32.partialorder %v430, 8.507059e+37
        %v432 = vand.u32 %v371, 2147483648
        %v433 = vor.u32 1.1754944e-38, %v432
        %v434 = vsel %vm431, %v433, %v429
        %v435 = vmul.f32 1.0, %v434
        %v436 = vrcp.pop %v372
        %v437 = vmul.f32 %v372, %v436
        %v438 = vsub.f32 1.0, %v437
        %v439 = vmul.f32 %v436, %v438
        %v440 = vadd.f32 %v436, %v439
        %vm441 = vweird.f32 %v372
        %vm442 = vweird.f32 %v436
        %vm443 = vmor %vm441, %vm442
        %v444 = vsel %vm443, %v436, %v440
        %v445 = vand.u32 2147483647, %v372
        %vm446 = vcmp.eq.f32.partialorder %v445, 8.507059e+37
        %v447 = vand.u32 %v372, 2147483648
        %v448 = vor.u32 1.1754944e-38, %v447
        %v449 = vsel %vm446, %v448, %v444
        %v450 = vmul.f32 1.0, %v449
        %v451 = vrcp.pop %v373
        %v452 = vmul.f32 %v373, %v451
        %v453 = vsub.f32 1.0, %v452
        %v454 = vmul.f32 %v451, %v453
        %v455 = vadd.f32 %v451, %v454
        %vm456 = vweird.f32 %v373
        %vm457 = vweird.f32 %v451
        %vm458 = vmor %vm456, %vm457
        %v459 = vsel %vm458, %v451, %v455
        %v460 = vand.u32 2147483647, %v373
        %vm461 = vcmp.eq.f32.partialorder %v460, 8.507059e+37
        %v462 = vand.u32 %v373, 2147483648
        %v463 = vor.u32 1.1754944e-38, %v462
        %v464 = vsel %vm461, %v463, %v459
        %v465 = vmul.f32 1.0, %v464
        %v466 = vrcp.pop %v374
        %v467 = vmul.f32 %v374, %v466
        %v468 = vsub.f32 1.0, %v467
        %v469 = vmul.f32 %v466, %v468
        %v470 = vadd.f32 %v466, %v469
        %vm471 = vweird.f32 %v374
        %vm472 = vweird.f32 %v466
        %vm473 = vmor %vm471, %vm472
        %v474 = vsel %vm473, %v466, %v470
        %v475 = vand.u32 2147483647, %v374
        %vm476 = vcmp.eq.f32.partialorder %v475, 8.507059e+37
        %v477 = vand.u32 %v374, 2147483648
        %v478 = vor.u32 1.1754944e-38, %v477
        %v479 = vsel %vm476, %v478, %v474
        %v480 = vmul.f32 1.0, %v479
        %v481 = vrcp.pop %v375
        %v482 = vmul.f32 %v375, %v481
        %v483 = vsub.f32 1.0, %v482
        %v484 = vmul.f32 %v481, %v483
        %v485 = vadd.f32 %v481, %v484
        %vm486 = vweird.f32 %v375
        %vm487 = vweird.f32 %v481
        %vm488 = vmor %vm486, %vm487
        %v489 = vsel %vm488, %v481, %v485
        %v490 = vand.u32 2147483647, %v375
        %vm491 = vcmp.eq.f32.partialorder %v490, 8.507059e+37
        %v492 = vand.u32 %v375, 2147483648
        %v493 = vor.u32 1.1754944e-38, %v492
        %v494 = vsel %vm491, %v493, %v489
        %v495 = vmul.f32 1.0, %v494
        %v496 = vadd.f32 %v390, %v450
        %v497 = vadd.f32 %v405, %v465
        %v498 = vadd.f32 %v420, %v480
        %v499 = vadd.f32 %v435, %v495
        %v500 = vmul.f32 %v191, %v496
        %v501 = vmul.f32 %v192, %v496
        %v502 = vmul.f32 %v193, %v497
        %v503 = vmul.f32 %v194, %v497
        %v504 = vmul.f32 %v195, %v498
        %v505 = vmul.f32 %v196, %v498
        %v506 = vmul.f32 %v197, %v499
        %v507 = vmul.f32 %v198, %v499
        %508 = vst [vmem:[%s190] sm:$0xff] %v500
        %509 = vst [vmem:[%s190 + $0x8] sm:$0xff] %v501
        %510 = vst [vmem:[%s190 + $0x10] sm:$0xff] %v502
        %511 = vst [vmem:[%s190 + $0x18] sm:$0xff] %v503
        %512 = vst [vmem:[%s190 + $0x20] sm:$0xff] %v504
        %513 = vst [vmem:[%s190 + $0x28] sm:$0xff] %v505
        %514 = vst [vmem:[%s190 + $0x30] sm:$0xff] %v506
        %515 = vst [vmem:[%s190 + $0x38] sm:$0xff] %v507
        %s516 = sand.u32 %s96, 1
        %s517 = scalar_lea.sflag [#allocation4], %s516
        %s518 = sand.u32 %s96, 1
        %s519 = smul.addr %s518, 64
        %s520 = scalar_lea.vmem [#allocation5], %s519
        // Predicated region
        $region37: #{tpu_custom_call.1} parent=31 // pred_check
          %p521 = pneg %p106
        $region38: #{tpu_custom_call.1} parent=31 // pred_check_branch
          %523 = sbr.rel (%p521) target = $region40
        $region39: #{tpu_custom_call.1} parent=31 // pred_region
          %525 = vsyncadd %s517, 0
          %s526 = smul.addr %s20, 8
          %s527 = smul.addr %s526, 8
          %s528 = scalar_lea.hbm %s3, %s527
          %s529 = sshll.u32 %s520, 4
          %s530 = int_to_ptr.vmem [resolvable:$true] %s529
          %s531 = sshll.u32 %s528, 4
          %s532 = int_to_ptr.hbm [resolvable:$true] %s531
          %537 = dma.vmem_to_hbm [thread:$0]  %s530, 1024, %s532, %s517, 256, 256, 16
        $region40: #{tpu_custom_call.1} parent=31 // pred_fallthru
          _
      $region32: #{tpu_custom_call.1} parent=5 // pred_fallthru
        _
      %p538 = scmp.le.s32.totalorder 2, %s15
      // Predicated region
      $region41: #{tpu_custom_call.1} parent=5 // pred_check
        %p539 = pneg %p538
      $region42: #{tpu_custom_call.1} parent=5 // pred_check_branch
        %541 = sbr.rel (%p539) target = $region44
      $region43: #{tpu_custom_call.1} parent=5 // pred_region
        %s542 = ssub.s32 %s15, 2
        // Predicated region
        $region45: #{tpu_custom_call.1} parent=43 // pred_check
          %p543 = pneg %p112
        $region46: #{tpu_custom_call.1} parent=43 // pred_check_branch
          %545 = sbr.rel (%p543) target = $region48
        $region47: #{tpu_custom_call.1} parent=43 // pred_region
          %s546 = sand.u32 %s97, 1
          %s547 = scalar_lea.sflag [#allocation4], %s546
          %s548 = sand.u32 %s97, 1
          %s549 = smul.addr %s548, 64
          %s550 = scalar_lea.vmem [#allocation5], %s549
          %552 = dma.done %s547, 1024
        $region48: #{tpu_custom_call.1} parent=43 // pred_fallthru
          _
      $region44: #{tpu_custom_call.1} parent=5 // pred_fallthru
        _
    $region6: #{tpu_custom_call.1} parent=1 // loop_footer
      %s19 = sadd.s32 1, %s15
    $region7: #{tpu_custom_call.1} parent=1 // loop_footer_branch
      %14 = sbr.rel target = $region3
    $region8: #{tpu_custom_call.1} parent=1 // loop_exit
      _
    %553 = vsyncpa [#allocation3], 1
    %s554 = scalar_lea.sflag [#allocation3], 1
    %555 = vsyncpa %s554, 1
    %556 = vsyncpa [#allocation4], 1
    %s557 = scalar_lea.sflag [#allocation4], 1
    %558 = vsyncpa %s557, 1

</llo_original>
